<compile_context>
chip_gen: v6e
topology: v6e:2x2x1
jax: 0.10.0
libtpu: 0.0.40
codegen_flags: <defaults>
</compile_context>

<pallas_src>
import functools

import numpy as np
import jax
import jax.numpy as jnp
from jax import lax
from jax.experimental import pallas as pl
from jax.experimental.pallas import tpu as pltpu


# ----------------------------------------------------------------------------
# beta schedule (numpy, float64 -> float32), matches make_beta_schedule('linear')
# ----------------------------------------------------------------------------
def make_beta_schedule_linear(n_timestep, beta_0=1e-4, beta_T=0.02):
    return np.linspace(beta_0, beta_T, n_timestep, dtype=np.float64)


def diffusion_buffers(beta_1, beta_T, T):
    betas = make_beta_schedule_linear(T, beta_1, beta_T)
    alphas = 1.0 - betas
    alphas_bar = np.cumprod(alphas)
    alphas_bar_prev = np.concatenate([np.ones(1), alphas_bar[:-1]])
    sqrt_recip = np.sqrt(1.0 / alphas_bar)
    sqrt_recipm1 = np.sqrt(1.0 / alphas_bar - 1.0)
    posterior_var = betas * (1.0 - alphas_bar_prev) / (1.0 - alphas_bar)
    posterior_log_var = np.log(np.maximum(posterior_var, 1e-20))
    coef1 = betas * np.sqrt(alphas_bar_prev) / (1.0 - alphas_bar)
    coef2 = (1.0 - alphas_bar_prev) * np.sqrt(alphas) / (1.0 - alphas_bar)
    return dict(
        sqrt_recip=sqrt_recip.astype(np.float32),
        sqrt_recipm1=sqrt_recipm1.astype(np.float32),
        coef1=coef1.astype(np.float32),
        coef2=coef2.astype(np.float32),
        log_var=posterior_log_var.astype(np.float32),
    )


# ----------------------------------------------------------------------------
# Pallas kernel: the FULL reverse-diffusion chain for one lane-dense pixel tile.
#   grid = (num_pixel_tiles,) -- timesteps run in an in-kernel fori_loop.
# ----------------------------------------------------------------------------
def denoise_sampler_kernel(coef_ref, cond_ref, x0_ref, noise_ref,
                           wct_ref, wxt_ref, b_ref, out_ref):
    T = noise_ref.shape[0]

    # Hoisted once per tile: eps_cond = b + Wc^T @ cond is time-invariant.
    eps_cond = b_ref[...] + jnp.dot(
        wct_ref[...], cond_ref[...], preferred_element_type=jnp.float32)
    wxt = wxt_ref[...]

    def posterior_mean(j, x):
        # Per-timestep scalars from SMEM (reversed-time order: j=0 <-> t=T-1).
        sqrt_recip = coef_ref[0, j]
        sqrt_recipm1 = coef_ref[1, j]
        mean_c1 = coef_ref[2, j]
        mean_c2 = coef_ref[3, j]
        # Stand-in "model": per-pixel 1x1 conv (block-diag in the packed layout);
        # the x_t half goes to the MXU, leaving the VPU for the posterior math.
        eps = eps_cond + jnp.dot(wxt, x, preferred_element_type=jnp.float32)
        x_recon = jnp.clip(sqrt_recip * x - sqrt_recipm1 * eps, -1.0, 1.0)
        return mean_c1 * x_recon + mean_c2 * x

    def body(j, x):
        # sigma = exp(0.5 * log_var); noise precomputed on the host.
        return posterior_mean(j, x) + coef_ref[4, j] * noise_ref[j]

    # Steps t = T-1 .. 1 (with noise), then the peeled t = 0 step (sigma == 0).
    x = lax.fori_loop(0, T - 1, body, x0_ref[...])
    x = posterior_mean(T - 1, x)
    out_ref[...] = jnp.clip(x, -1.0, 1.0)


# ----------------------------------------------------------------------------
# Tiling helpers
# ----------------------------------------------------------------------------
def pick_tile_n(n_lanes, t_steps, rows, vmem_target=24 * 2**20):
    """Lane-dense pixel tile: multiple of 128, sized against a VMEM budget
    (the per-tile noise block is T x rows x tile_n, double-buffered) and
    preferring >= 2 tiles so v7x can shard the parallel axis across both TCs."""
    per_lane = 4 * rows * (2 * t_steps + 10)     # noise(dbl) + cond/x/out(dbl) + temps
    cap = max(128, (vmem_target // per_lane) // 128 * 128)
    cap = min(cap, 32768)
    if n_lanes <= 128:
        return 128
    half = ((n_lanes + 255) // 256) * 128        # ceil(n_lanes / 2), 128-aligned
    return min(cap, max(128, half))


def _vmem_budget_bytes(rows, tile_n, t_steps):
    est = 4 * rows * tile_n * (2 * (2 + t_steps) + 8)
    # >= 32 MiB is safe on every generation (v7x physical VMEM is 64 MiB).
    return int(min(max(est, 32 * 2**20), 48 * 2**20))


# ----------------------------------------------------------------------------
# Jitted wrapper around the pallas_call (layout plumbing lives here).
# ----------------------------------------------------------------------------
@functools.partial(jax.jit, static_argnames=("tile_n", "pack"))
def _sample_pallas(coef_tab, condit_nchw, x_T_nchw, noise, wct_big, wxt_big,
                   b_col, *, tile_n, pack):
    B, C, H, W = x_T_nchw.shape
    R = C * pack
    N = B * H * W
    T = coef_tab.shape[1]
    Npad = noise.shape[-1]                  # packed width, multiple of tile_n
    n_tiles = Npad // tile_n

    def to_packed(x):
        # NCHW -> (C, N) pixels-in-lanes -> (pack*C, Npad): full sublane occupancy.
        x = jnp.transpose(x, (1, 0, 2, 3)).reshape(C, N).astype(jnp.float32)
        x = jnp.pad(x, ((0, 0), (0, Npad * pack - N)))
        return x.reshape(C, pack, Npad).transpose(1, 0, 2).reshape(R, Npad)

    cond_p = to_packed(condit_nchw)
    x_p = to_packed(x_T_nchw)

    out = pl.pallas_call(
        denoise_sampler_kernel,
        out_shape=jax.ShapeDtypeStruct((R, Npad), jnp.float32),
        grid_spec=pltpu.PrefetchScalarGridSpec(
            num_scalar_prefetch=0,
            grid=(n_tiles,),
            in_specs=[
                pl.BlockSpec(memory_space=pltpu.SMEM),              # coef table (5, T)
                pl.BlockSpec((R, tile_n), lambda i: (0, i)),        # condit (packed)
                pl.BlockSpec((R, tile_n), lambda i: (0, i)),        # x_T (packed)
                pl.BlockSpec((T, R, tile_n), lambda i: (0, 0, i)),  # noise, all T steps
                pl.BlockSpec((R, R), lambda i: (0, 0)),             # Wc^T (block diag)
                pl.BlockSpec((R, R), lambda i: (0, 0)),             # Wx^T (block diag)
                pl.BlockSpec((R, 1), lambda i: (0, 0)),             # bias column
            ],
            out_specs=pl.BlockSpec((R, tile_n), lambda i: (0, i)),
        ),
        compiler_params=pltpu.CompilerParams(
            dimension_semantics=("parallel",),
            vmem_limit_bytes=_vmem_budget_bytes(R, tile_n, T)),
    )(coef_tab, cond_p, x_p, noise, wct_big, wxt_big, b_col)

    # Unpack: (pack*C, Npad) -> (C, pack*Npad) -> trim padding -> NCHW.
    x0 = out.reshape(pack, C, Npad).transpose(1, 0, 2).reshape(C, pack * Npad)
    x0 = x0[:, :N].reshape(C, B, H, W)
    return jnp.transpose(x0, (1, 0, 2, 3))


# ----------------------------------------------------------------------------
# Sampler entry point: coefficient table, packed weights, tile geometry, noise.
# ----------------------------------------------------------------------------
def gaussian_diffusion_sample(condit_nchw, x_T_nchw, w, b, bufs, T, noise_key):
    B, C, H, W = x_T_nchw.shape
    N = B * H * W

    # Sublane packing: with C < 8 channels, pack 8//C pixel groups on sublanes.
    pack = 8 // C if (C <= 8 and 8 % C == 0) else 1
    R = C * pack

    # (5, T) coefficient table in reversed-time order (long axis last for SMEM).
    ts = np.arange(T - 1, -1, -1)
    tab = np.zeros((5, T), np.float32)
    tab[0] = bufs["sqrt_recip"][ts]
    tab[1] = bufs["sqrt_recipm1"][ts]
    tab[2] = bufs["coef1"][ts]
    tab[3] = bufs["coef2"][ts]
    sigma = np.exp(0.5 * bufs["log_var"][ts]).astype(np.float32)
    sigma[ts == 0] = 0.0                      # t == 0 uses exactly zero noise
    tab[4] = sigma

    # Split the 1x1-conv weight (2C, C) into transposed per-input blocks and
    # block-diagonalize for the packed layout: eps = Wc^T@cond + Wx^T@x + b.
    w = np.asarray(w, np.float32)
    eye_p = np.eye(pack, dtype=np.float32)
    wct_big = np.kron(eye_p, np.ascontiguousarray(w[:C, :].T))   # (R, R)
    wxt_big = np.kron(eye_p, np.ascontiguousarray(w[C:, :].T))   # (R, R)
    b_col = np.tile(np.asarray(b, np.float32).reshape(C), pack).reshape(R, 1)

    # Tile / pad geometry: lane-align the packed pixel count, then pad up to a
    # multiple of the chosen tile (never shrink the tile toward 128).
    n_group = -(-N // pack)
    n_lanes = ((n_group + 127) // 128) * 128
    tile_n = pick_tile_n(n_lanes, T, R)
    Npad = -(-n_lanes // tile_n) * tile_n

    # Host-side Gaussian noise for all T steps in the packed layout; slice
    # j = T-1 (t == 0) is never consumed because that step is peeled (sigma=0).
    noise = jax.random.normal(noise_key, (T, R, Npad), jnp.float32)

    return _sample_pallas(
        jnp.asarray(tab), condit_nchw, x_T_nchw, noise,
        jnp.asarray(wct_big), jnp.asarray(wxt_big), jnp.asarray(b_col),
        tile_n=tile_n, pack=pack,
    )


if __name__ == "__main__":
    # Small shapes consistent with the module: batch=2, channels=4, spatial=16.
    B, C, H, W = 2, 4, 16, 16
    T = 8
    beta_1, beta_T = 1e-4, 0.02

    key = jax.random.PRNGKey(0)
    k_cond, k_x, k_noise = jax.random.split(key, 3)
    condit = jax.random.normal(k_cond, (B, C, H, W), jnp.float32)
    x_T = jax.random.normal(k_x, (B, C, H, W), jnp.float32)

    # Deterministic stand-in "model" parameters: 1x1 conv, 2C -> C.
    # TODO(synk): real SR3 UNet denoiser (attention/resblocks/time embedding)
    #             is not translatable to a single Pallas kernel.
    kin, kout = 2 * C, C
    w = (np.arange(kin * kout, dtype=np.float32).reshape(kin, kout) % 7 - 3.0) * 0.05
    b = np.linspace(-0.1, 0.1, kout, dtype=np.float32)

    bufs = diffusion_buffers(beta_1, beta_T, T)

    x_0 = gaussian_diffusion_sample(condit, x_T, w, b, bufs, T, noise_key=k_noise)
    x_0 = jax.block_until_ready(x_0)

    assert x_0.shape == (B, C, H, W)
    assert not bool(jnp.any(jnp.isnan(x_0))), "nan in tensor."
    print("KERNEL_OK")
</pallas_src>

<mosaic_0001>
module attributes {stable_mosaic.version = 11 : i64} {
  func.func @denoise_sampler_kernel(%arg0: i32, %arg1: memref<5x8xf32, #tpu.memory_space<smem>>, %arg2: memref<8x128xf32, #tpu.memory_space<vmem>>, %arg3: memref<8x128xf32, #tpu.memory_space<vmem>>, %arg4: memref<8x8x128xf32, #tpu.memory_space<vmem>>, %arg5: memref<8x8xf32, #tpu.memory_space<vmem>>, %arg6: memref<8x8xf32, #tpu.memory_space<vmem>>, %arg7: memref<8x1xf32, #tpu.memory_space<vmem>>, %arg8: memref<8x128xf32, #tpu.memory_space<vmem>>) attributes {dimension_semantics = [#tpu.dimension_semantics<parallel>], iteration_bounds = array<i64: 2>, scalar_prefetch = 0 : i64, scratch_operands = 0 : i64, tpu.core_type = #tpu.core_type<tc>, window_params = [{transform_indices = @transform_0, window_bounds = array<i64: 5, 8>}, {transform_indices = @transform_1, window_bounds = array<i64: 8, 128>}, {transform_indices = @transform_2, window_bounds = array<i64: 8, 128>}, {transform_indices = @transform_3, window_bounds = array<i64: 8, 8, 128>}, {pipeline_mode = #tpu.pipeline_mode<synchronous>, transform_indices = @transform_4, window_bounds = array<i64: 8, 8>}, {pipeline_mode = #tpu.pipeline_mode<synchronous>, transform_indices = @transform_5, window_bounds = array<i64: 8, 8>}, {pipeline_mode = #tpu.pipeline_mode<synchronous>, transform_indices = @transform_6, window_bounds = array<i64: 8, 1>}, {transform_indices = @transform_7, window_bounds = array<i64: 8, 128>}]} {
    %c0 = arith.constant 0 : index
    %c0_0 = arith.constant 0 : index
    %0 = vector.load %arg7[%c0, %c0_0] : memref<8x1xf32, #tpu.memory_space<vmem>>, vector<8x1xf32>
    %c0_1 = arith.constant 0 : index
    %c0_2 = arith.constant 0 : index
    %1 = vector.load %arg5[%c0_1, %c0_2] : memref<8x8xf32, #tpu.memory_space<vmem>>, vector<8x8xf32>
    %c0_3 = arith.constant 0 : index
    %c0_4 = arith.constant 0 : index
    %2 = vector.load %arg2[%c0_3, %c0_4] : memref<8x128xf32, #tpu.memory_space<vmem>>, vector<8x128xf32>
    %cst = arith.constant dense<0.000000e+00> : vector<8x128xf32>
    %3 = tpu.matmul %1, %2, %cst {dimension_numbers = #tpu.dot_dimension_numbers<[1], [0], [0], [1], [0, 0, 1, 1], [], []>} : vector<8x8xf32>, vector<8x128xf32>, vector<8x128xf32> -> vector<8x128xf32>
    %4 = vector.broadcast %0 : vector<8x1xf32> to vector<8x128xf32>
    %5 = arith.addf %4, %3 : vector<8x128xf32>
    %c0_5 = arith.constant 0 : index
    %c0_6 = arith.constant 0 : index
    %6 = vector.load %arg6[%c0_5, %c0_6] : memref<8x8xf32, #tpu.memory_space<vmem>>, vector<8x8xf32>
    %c0_7 = arith.constant 0 : index
    %c0_8 = arith.constant 0 : index
    %7 = vector.load %arg3[%c0_7, %c0_8] : memref<8x128xf32, #tpu.memory_space<vmem>>, vector<8x128xf32>
    %c0_i32 = arith.constant 0 : i32
    %c7_i32 = arith.constant 7 : i32
    %8 = arith.addi %c0_i32, %c7_i32 : i32
    %c1_i32 = arith.constant 1 : i32
    %9 = scf.for %arg9 = %c0_i32 to %8 step %c1_i32 iter_args(%arg10 = %7) -> (vector<8x128xf32>)  : i32 {
      %c0_21 = arith.constant 0 : index
      %35 = arith.index_cast %arg9 : i32 to index
      %36 = memref.load %arg1[%c0_21, %35] : memref<5x8xf32, #tpu.memory_space<smem>>
      %c1_22 = arith.constant 1 : index
      %37 = arith.index_cast %arg9 : i32 to index
      %38 = memref.load %arg1[%c1_22, %37] : memref<5x8xf32, #tpu.memory_space<smem>>
      %c2_23 = arith.constant 2 : index
      %39 = arith.index_cast %arg9 : i32 to index
      %40 = memref.load %arg1[%c2_23, %39] : memref<5x8xf32, #tpu.memory_space<smem>>
      %c3_24 = arith.constant 3 : index
      %41 = arith.index_cast %arg9 : i32 to index
      %42 = memref.load %arg1[%c3_24, %41] : memref<5x8xf32, #tpu.memory_space<smem>>
      %cst_25 = arith.constant dense<0.000000e+00> : vector<8x128xf32>
      %43 = tpu.matmul %6, %arg10, %cst_25 {dimension_numbers = #tpu.dot_dimension_numbers<[1], [0], [0], [1], [0, 0, 1, 1], [], []>} : vector<8x8xf32>, vector<8x128xf32>, vector<8x128xf32> -> vector<8x128xf32>
      %44 = arith.addf %5, %43 : vector<8x128xf32>
      %45 = vector.broadcast %36 : f32 to vector<8x128xf32>
      %46 = arith.mulf %45, %arg10 : vector<8x128xf32>
      %47 = vector.broadcast %38 : f32 to vector<8x128xf32>
      %48 = arith.mulf %47, %44 : vector<8x128xf32>
      %49 = arith.subf %46, %48 : vector<8x128xf32>
      %cst_26 = arith.constant -1.000000e+00 : f32
      %cst_27 = arith.constant 1.000000e+00 : f32
      %50 = vector.broadcast %cst_26 : f32 to vector<8x128xf32>
      %51 = arith.maximumf %50, %49 : vector<8x128xf32>
      %52 = vector.broadcast %cst_27 : f32 to vector<8x128xf32>
      %53 = arith.minimumf %52, %51 : vector<8x128xf32>
      %54 = vector.broadcast %40 : f32 to vector<8x128xf32>
      %55 = arith.mulf %54, %53 : vector<8x128xf32>
      %56 = vector.broadcast %42 : f32 to vector<8x128xf32>
      %57 = arith.mulf %56, %arg10 : vector<8x128xf32>
      %58 = arith.addf %55, %57 : vector<8x128xf32>
      %c4 = arith.constant 4 : index
      %59 = arith.index_cast %arg9 : i32 to index
      %60 = memref.load %arg1[%c4, %59] : memref<5x8xf32, #tpu.memory_space<smem>>
      %61 = arith.index_cast %arg9 : i32 to index
      %c0_28 = arith.constant 0 : index
      %c0_29 = arith.constant 0 : index
      %62 = vector.load %arg4[%61, %c0_28, %c0_29] : memref<8x8x128xf32, #tpu.memory_space<vmem>>, vector<1x8x128xf32>
      %63 = vector.shape_cast %62 : vector<1x8x128xf32> to vector<8x128xf32>
      %64 = vector.broadcast %60 : f32 to vector<8x128xf32>
      %65 = arith.mulf %64, %63 : vector<8x128xf32>
      %66 = arith.addf %58, %65 : vector<8x128xf32>
      scf.yield %66 : vector<8x128xf32>
    }
    %c7_i32_9 = arith.constant 7 : i32
    %c0_10 = arith.constant 0 : index
    %c7 = arith.constant 7 : index
    %10 = memref.load %arg1[%c0_10, %c7] : memref<5x8xf32, #tpu.memory_space<smem>>
    %c1 = arith.constant 1 : index
    %c7_11 = arith.constant 7 : index
    %11 = memref.load %arg1[%c1, %c7_11] : memref<5x8xf32, #tpu.memory_space<smem>>
    %c2 = arith.constant 2 : index
    %c7_12 = arith.constant 7 : index
    %12 = memref.load %arg1[%c2, %c7_12] : memref<5x8xf32, #tpu.memory_space<smem>>
    %c3 = arith.constant 3 : index
    %c7_13 = arith.constant 7 : index
    %13 = memref.load %arg1[%c3, %c7_13] : memref<5x8xf32, #tpu.memory_space<smem>>
    %cst_14 = arith.constant dense<0.000000e+00> : vector<8x128xf32>
    %14 = tpu.matmul %6, %9, %cst_14 {dimension_numbers = #tpu.dot_dimension_numbers<[1], [0], [0], [1], [0, 0, 1, 1], [], []>} : vector<8x8xf32>, vector<8x128xf32>, vector<8x128xf32> -> vector<8x128xf32>
    %15 = arith.addf %5, %14 : vector<8x128xf32>
    %16 = vector.broadcast %10 : f32 to vector<8x128xf32>
    %17 = arith.mulf %16, %9 : vector<8x128xf32>
    %18 = vector.broadcast %11 : f32 to vector<8x128xf32>
    %19 = arith.mulf %18, %15 : vector<8x128xf32>
    %20 = arith.subf %17, %19 : vector<8x128xf32>
    %cst_15 = arith.constant -1.000000e+00 : f32
    %cst_16 = arith.constant 1.000000e+00 : f32
    %21 = vector.broadcast %cst_15 : f32 to vector<8x128xf32>
    %22 = arith.maximumf %21, %20 : vector<8x128xf32>
    %23 = vector.broadcast %cst_16 : f32 to vector<8x128xf32>
    %24 = arith.minimumf %23, %22 : vector<8x128xf32>
    %25 = vector.broadcast %12 : f32 to vector<8x128xf32>
    %26 = arith.mulf %25, %24 : vector<8x128xf32>
    %27 = vector.broadcast %13 : f32 to vector<8x128xf32>
    %28 = arith.mulf %27, %9 : vector<8x128xf32>
    %29 = arith.addf %26, %28 : vector<8x128xf32>
    %cst_17 = arith.constant -1.000000e+00 : f32
    %cst_18 = arith.constant 1.000000e+00 : f32
    %30 = vector.broadcast %cst_17 : f32 to vector<8x128xf32>
    %31 = arith.maximumf %30, %29 : vector<8x128xf32>
    %32 = vector.broadcast %cst_18 : f32 to vector<8x128xf32>
    %33 = arith.minimumf %32, %31 : vector<8x128xf32>
    %c0_19 = arith.constant 0 : index
    %c0_20 = arith.constant 0 : index
    %34 = vector.load %arg8[%c0_19, %c0_20] : memref<8x128xf32, #tpu.memory_space<vmem>>, vector<8x128xf32>
    tpu.vector_store %arg8[%c0_19, %c0_20], %33 {strides = array<i32>} : memref<8x128xf32, #tpu.memory_space<vmem>>, vector<8x128xf32>,
    return
  }
  func.func @transform_0(%arg0: i32) -> (i32, i32) {
    %c0_i32 = arith.constant 0 : i32
    %c0_i32_0 = arith.constant 0 : i32
    %c0_i32_1 = arith.constant 0 : i32
    return %c0_i32, %c0_i32_0 : i32, i32
  }
  func.func @transform_1(%arg0: i32) -> (i32, i32) {
    %c0_i32 = arith.constant 0 : i32
    %c0_i32_0 = arith.constant 0 : i32
    return %c0_i32, %arg0 : i32, i32
  }
  func.func @transform_2(%arg0: i32) -> (i32, i32) {
    %c0_i32 = arith.constant 0 : i32
    %c0_i32_0 = arith.constant 0 : i32
    return %c0_i32, %arg0 : i32, i32
  }
  func.func @transform_3(%arg0: i32) -> (i32, i32, i32) {
    %c0_i32 = arith.constant 0 : i32
    %c0_i32_0 = arith.constant 0 : i32
    %c0_i32_1 = arith.constant 0 : i32
    return %c0_i32, %c0_i32_0, %arg0 : i32, i32, i32
  }
  func.func @transform_4(%arg0: i32) -> (i32, i32) {
    %c0_i32 = arith.constant 0 : i32
    %c0_i32_0 = arith.constant 0 : i32
    %c0_i32_1 = arith.constant 0 : i32
    return %c0_i32, %c0_i32_0 : i32, i32
  }
  func.func @transform_5(%arg0: i32) -> (i32, i32) {
    %c0_i32 = arith.constant 0 : i32
    %c0_i32_0 = arith.constant 0 : i32
    %c0_i32_1 = arith.constant 0 : i32
    return %c0_i32, %c0_i32_0 : i32, i32
  }
  func.func @transform_6(%arg0: i32) -> (i32, i32) {
    %c0_i32 = arith.constant 0 : i32
    %c0_i32_0 = arith.constant 0 : i32
    %c0_i32_1 = arith.constant 0 : i32
    return %c0_i32, %c0_i32_0 : i32, i32
  }
  func.func @transform_7(%arg0: i32) -> (i32, i32) {
    %c0_i32 = arith.constant 0 : i32
    %c0_i32_0 = arith.constant 0 : i32
    return %c0_i32, %arg0 : i32, i32
  }
}

</mosaic_0001>

<llo_original>
// kernel: _sample_pallas.1
$region0: #{_sample_pallas.1}
  #allocation0 [shape = 'u32[]', space=smem, size = 0x4, offset = 0x4, fixed_abs, tag = 'smem constant byte address 0x4 - core index']
  #allocation1 [shape = 'u32[144,128]{1,0:T(1,128)}', space=vmem, size = 0x12000, scoped, tag = 'internal scratch']
  %s0 = inlined_call_operand.vmem [shape: f32[5,8], index: 0, kind: input, shape index: {}]
  %s1 = inlined_call_operand.vmem [shape: f32[8,256], index: 1, kind: input, shape index: {}]
  %s2 = inlined_call_operand.vmem [shape: f32[8,256], index: 2, kind: input, shape index: {}]
  %s3 = inlined_call_operand.vmem [shape: f32[8,8,256], index: 3, kind: input, shape index: {}]
  %s4 = inlined_call_operand.vmem [shape: f32[8,8], index: 4, kind: input, shape index: {}]
  %s5 = inlined_call_operand.vmem [shape: f32[8,8], index: 5, kind: input, shape index: {}]
  %s6 = inlined_call_operand.vmem [shape: f32[8,1], index: 6, kind: input, shape index: {}]
  %s7 = inlined_call_operand.vmem [shape: f32[8,256], index: 7, kind: output, shape index: {}]
  %s8 = sld [smem:[#allocation0]]
  $region110: #{_sample_pallas.1} parent=0
    _
  %s10 = ssub.s32 1, %s8
  %s11 = scalar_select 0, %s10, %s8
  $region1: #{_sample_pallas.1} parent=0
    #allocation2 [shape = 'u8[4096]{0}', space=smem, size = 0x1000, scoped, tag = 'input window, operand 0, single buffered']
    #allocation3 [shape = 's32[2]{0}', space=sflag, size = 0x8, scoped, tag = 'scoped memory for _sample_pallas.1']
    #allocation4 [shape = 'u8[65536]{0}', space=vmem, size = 0x10000, scoped, tag = 'input window, operand 3']
    %12 = vsyncpa [#allocation3], 0
    loop: start=0, step=1, limit=4
    $region2: #{_sample_pallas.1} parent=1 // loop_pre_header
      _
    $region3: #{_sample_pallas.1} parent=1 // loop_header
      %s14 = sphi 0, %s18
      %p15 = scmp.ge.s32.totalorder %s14, 4
      %s22 = sphi 0, %s22
      %s24 = sphi 0, %s22
      %s25 = sphi 0, %s24
      %s39 = sphi 0, %s25
      %s45 = sphi 0, %s47
      %s48 = sphi 0, %s45
      %s49 = sphi 0, %s48
      %s65 = sphi 0, %s49
      %s71 = sphi 0, %s73
      %s74 = sphi 0, %s71
      %s75 = sphi 0, %s74
      %s91 = sphi 0, %s75
      %s97 = sphi 0, %s99
      %s100 = sphi 0, %s97
      %s101 = sphi 0, %s100
      %s117 = sphi 0, %s101
      %s121 = sphi 0, %s121
      %s123 = sphi 0, %s121
      %s124 = sphi 0, %s123
      %s138 = sphi 0, %s124
      %s142 = sphi 0, %s142
      %s144 = sphi 0, %s142
      %s145 = sphi 0, %s144
      %s159 = sphi 0, %s145
      %s163 = sphi 0, %s163
      %s165 = sphi 0, %s163
      %s166 = sphi 0, %s165
      %s180 = sphi 0, %s166
      %s186 = sphi 0, %s188
      %s189 = sphi 0, %s186
      %s190 = sphi 0, %s189
      %s206 = sphi 0, %s190
    $region4: #{_sample_pallas.1} parent=1 // loop_header_branch
      %17 = sbr.rel (%p15) target = $region8
    $region5: #{_sample_pallas.1} parent=1 // loop_body
      %s19 = ssub.s32 %s14, 1
      %s20 = ssub.s32 %s14, 2
      %s21 = sadd.s32 %s14, 1
      %s23 = sadd.s32 %s22, 1
      %p26 = scmp.eq.s32.totalorder %s14, 1
      %p27 = scmp.ne.s32.totalorder %s22, %s24
      %p28 = scmp.eq.s32.totalorder %s14, 0
      %p29 = por %p27, %p28
      %p30 = scmp.ne.s32.totalorder %s22, %s24
      %p31 = scmp.eq.s32.totalorder %s19, 1
      %p32 = por %p30, %p31
      %p33 = scmp.ne.s32.totalorder %s24, %s25
      %p34 = scmp.eq.s32.totalorder %s19, 0
      %p35 = por %p33, %p34
      %p36 = scmp.ne.s32.totalorder %s24, %s25
      %p37 = scmp.eq.s32.totalorder %s20, 1
      %p38 = por %p36, %p37
      %p40 = scmp.ne.s32.totalorder %s25, %s39
      %p41 = scmp.eq.s32.totalorder %s20, 0
      %p42 = por %p40, %p41
      %s43 = ssub.s32 %s14, %s21
      %p44 = scmp.eq.s32.totalorder %s43, 0
      %s46 = sadd.s32 %s45, 1
      %s47 = scalar_select %p44, %s45, %s46
      %p50 = pneg %p44
      %p51 = scmp.eq.s32.totalorder %s14, 1
      %p52 = por %p50, %p51
      %p53 = scmp.ne.s32.totalorder %s45, %s48
      %p54 = scmp.eq.s32.totalorder %s14, 0
      %p55 = por %p53, %p54
      %p56 = scmp.ne.s32.totalorder %s45, %s48
      %p57 = scmp.eq.s32.totalorder %s19, 1
      %p58 = por %p56, %p57
      %p59 = scmp.ne.s32.totalorder %s48, %s49
      %p60 = scmp.eq.s32.totalorder %s19, 0
      %p61 = por %p59, %p60
      %p62 = scmp.ne.s32.totalorder %s48, %s49
      %p63 = scmp.eq.s32.totalorder %s20, 1
      %p64 = por %p62, %p63
      %p66 = scmp.ne.s32.totalorder %s49, %s65
      %p67 = scmp.eq.s32.totalorder %s20, 0
      %p68 = por %p66, %p67
      %s69 = ssub.s32 %s14, %s21
      %p70 = scmp.eq.s32.totalorder %s69, 0
      %s72 = sadd.s32 %s71, 1
      %s73 = scalar_select %p70, %s71, %s72
      %p76 = pneg %p70
      %p77 = scmp.eq.s32.totalorder %s14, 1
      %p78 = por %p76, %p77
      %p79 = scmp.ne.s32.totalorder %s71, %s74
      %p80 = scmp.eq.s32.totalorder %s14, 0
      %p81 = por %p79, %p80
      %p82 = scmp.ne.s32.totalorder %s71, %s74
      %p83 = scmp.eq.s32.totalorder %s19, 1
      %p84 = por %p82, %p83
      %p85 = scmp.ne.s32.totalorder %s74, %s75
      %p86 = scmp.eq.s32.totalorder %s19, 0
      %p87 = por %p85, %p86
      %p88 = scmp.ne.s32.totalorder %s74, %s75
      %p89 = scmp.eq.s32.totalorder %s20, 1
      %p90 = por %p88, %p89
      %p92 = scmp.ne.s32.totalorder %s75, %s91
      %p93 = scmp.eq.s32.totalorder %s20, 0
      %p94 = por %p92, %p93
      %s95 = ssub.s32 %s14, %s21
      %p96 = scmp.eq.s32.totalorder %s95, 0
      %s98 = sadd.s32 %s97, 1
      %s99 = scalar_select %p96, %s97, %s98
      %p102 = pneg %p96
      %p103 = scmp.eq.s32.totalorder %s14, 1
      %p104 = por %p102, %p103
      %p105 = scmp.ne.s32.totalorder %s97, %s100
      %p106 = scmp.eq.s32.totalorder %s14, 0
      %p107 = por %p105, %p106
      %p108 = scmp.ne.s32.totalorder %s97, %s100
      %p109 = scmp.eq.s32.totalorder %s19, 1
      %p110 = por %p108, %p109
      %p111 = scmp.ne.s32.totalorder %s100, %s101
      %p112 = scmp.eq.s32.totalorder %s19, 0
      %p113 = por %p111, %p112
      %p114 = scmp.ne.s32.totalorder %s100, %s101
      %p115 = scmp.eq.s32.totalorder %s20, 1
      %p116 = por %p114, %p115
      %p118 = scmp.ne.s32.totalorder %s101, %s117
      %p119 = scmp.eq.s32.totalorder %s20, 0
      %p120 = por %p118, %p119
      %s122 = sadd.s32 %s121, 1
      %p125 = scmp.eq.s32.totalorder %s14, 1
      %p126 = scmp.ne.s32.totalorder %s121, %s123
      %p127 = scmp.eq.s32.totalorder %s14, 0
      %p128 = por %p126, %p127
      %p129 = scmp.ne.s32.totalorder %s121, %s123
      %p130 = scmp.eq.s32.totalorder %s19, 1
      %p131 = por %p129, %p130
      %p132 = scmp.ne.s32.totalorder %s123, %s124
      %p133 = scmp.eq.s32.totalorder %s19, 0
      %p134 = por %p132, %p133
      %p135 = scmp.ne.s32.totalorder %s123, %s124
      %p136 = scmp.eq.s32.totalorder %s20, 1
      %p137 = por %p135, %p136
      %p139 = scmp.ne.s32.totalorder %s124, %s138
      %p140 = scmp.eq.s32.totalorder %s20, 0
      %p141 = por %p139, %p140
      %s143 = sadd.s32 %s142, 1
      %p146 = scmp.eq.s32.totalorder %s14, 1
      %p147 = scmp.ne.s32.totalorder %s142, %s144
      %p148 = scmp.eq.s32.totalorder %s14, 0
      %p149 = por %p147, %p148
      %p150 = scmp.ne.s32.totalorder %s142, %s144
      %p151 = scmp.eq.s32.totalorder %s19, 1
      %p152 = por %p150, %p151
      %p153 = scmp.ne.s32.totalorder %s144, %s145
      %p154 = scmp.eq.s32.totalorder %s19, 0
      %p155 = por %p153, %p154
      %p156 = scmp.ne.s32.totalorder %s144, %s145
      %p157 = scmp.eq.s32.totalorder %s20, 1
      %p158 = por %p156, %p157
      %p160 = scmp.ne.s32.totalorder %s145, %s159
      %p161 = scmp.eq.s32.totalorder %s20, 0
      %p162 = por %p160, %p161
      %s164 = sadd.s32 %s163, 1
      %p167 = scmp.eq.s32.totalorder %s14, 1
      %p168 = scmp.ne.s32.totalorder %s163, %s165
      %p169 = scmp.eq.s32.totalorder %s14, 0
      %p170 = por %p168, %p169
      %p171 = scmp.ne.s32.totalorder %s163, %s165
      %p172 = scmp.eq.s32.totalorder %s19, 1
      %p173 = por %p171, %p172
      %p174 = scmp.ne.s32.totalorder %s165, %s166
      %p175 = scmp.eq.s32.totalorder %s19, 0
      %p176 = por %p174, %p175
      %p177 = scmp.ne.s32.totalorder %s165, %s166
      %p178 = scmp.eq.s32.totalorder %s20, 1
      %p179 = por %p177, %p178
      %p181 = scmp.ne.s32.totalorder %s166, %s180
      %p182 = scmp.eq.s32.totalorder %s20, 0
      %p183 = por %p181, %p182
      %s184 = ssub.s32 %s14, %s21
      %p185 = scmp.eq.s32.totalorder %s184, 0
      %s187 = sadd.s32 %s186, 1
      %s188 = scalar_select %p185, %s186, %s187
      %p191 = pneg %p185
      %p192 = scmp.eq.s32.totalorder %s14, 1
      %p193 = por %p191, %p192
      %p194 = scmp.ne.s32.totalorder %s186, %s189
      %p195 = scmp.eq.s32.totalorder %s14, 0
      %p196 = por %p194, %p195
      %p197 = scmp.ne.s32.totalorder %s186, %s189
      %p198 = scmp.eq.s32.totalorder %s19, 1
      %p199 = por %p197, %p198
      %p200 = scmp.ne.s32.totalorder %s189, %s190
      %p201 = scmp.eq.s32.totalorder %s19, 0
      %p202 = por %p200, %p201
      %p203 = scmp.ne.s32.totalorder %s189, %s190
      %p204 = scmp.eq.s32.totalorder %s20, 1
      %p205 = por %p203, %p204
      %p207 = scmp.ne.s32.totalorder %s190, %s206
      %p208 = scmp.eq.s32.totalorder %s20, 0
      %p209 = por %p207, %p208
      %p210 = scmp.le.s32.totalorder 1, %s14
      %p211 = scmp.lt.s32.totalorder %s14, 3
      %p212 = pnand %p210, %p211
      %p213 = pneg %p212
      // Predicated region
      $region9: #{_sample_pallas.1} parent=5 // pred_check
        _
      $region10: #{_sample_pallas.1} parent=5 // pred_check_branch
        %215 = sbr.rel (%p212) target = $region12
      $region11: #{_sample_pallas.1} parent=5 // pred_region
        %s216 = ssub.s32 %s14, 1
        // Predicated region
        $region13: #{_sample_pallas.1} parent=11 // pred_check
          %p217 = pneg %p35
        $region14: #{_sample_pallas.1} parent=11 // pred_check_branch
          %219 = sbr.rel (%p217) target = $region16
        $region15: #{_sample_pallas.1} parent=11 // pred_region
          %s221 = ssub.s32 128, 128
          %222 = vsyncadd [#allocation3], %s221
          %s224 = sshll.u32 %s0, 4
          %s225 = int_to_ptr.vmem [resolvable:$true] %s224
          %227 = dma.vmem_to_smem %s225, 128, [#allocation2], [#allocation3]
        $region16: #{_sample_pallas.1} parent=11 // pred_fallthru
          _
        // Predicated region
        $region17: #{_sample_pallas.1} parent=11 // pred_check
          %p228 = pneg %p134
        $region18: #{_sample_pallas.1} parent=11 // pred_check_branch
          %230 = sbr.rel (%p228) target = $region20
        $region19: #{_sample_pallas.1} parent=11 // pred_region
          _
        $region20: #{_sample_pallas.1} parent=11 // pred_fallthru
          _
        // Predicated region
        $region21: #{_sample_pallas.1} parent=11 // pred_check
          %p231 = pneg %p155
        $region22: #{_sample_pallas.1} parent=11 // pred_check_branch
          %233 = sbr.rel (%p231) target = $region24
        $region23: #{_sample_pallas.1} parent=11 // pred_region
          _
        $region24: #{_sample_pallas.1} parent=11 // pred_fallthru
          _
        // Predicated region
        $region25: #{_sample_pallas.1} parent=11 // pred_check
          %p234 = pneg %p176
        $region26: #{_sample_pallas.1} parent=11 // pred_check_branch
          %236 = sbr.rel (%p234) target = $region28
        $region27: #{_sample_pallas.1} parent=11 // pred_region
          _
        $region28: #{_sample_pallas.1} parent=11 // pred_fallthru
          _
      $region12: #{_sample_pallas.1} parent=5 // pred_fallthru
        _
      %p237 = scmp.lt.s32.totalorder %s14, 2
      // Predicated region
      $region29: #{_sample_pallas.1} parent=5 // pred_check
        %p238 = pneg %p237
      $region30: #{_sample_pallas.1} parent=5 // pred_check_branch
        %240 = sbr.rel (%p238) target = $region32
      $region31: #{_sample_pallas.1} parent=5 // pred_region
        // Predicated region
        $region33: #{_sample_pallas.1} parent=31 // pred_check
          %p241 = pneg %p55
        $region34: #{_sample_pallas.1} parent=31 // pred_check_branch
          %243 = sbr.rel (%p241) target = $region36
        $region35: #{_sample_pallas.1} parent=31 // pred_region
          %p244 = scmp.lt.s32.totalorder %s14, 1
          %s245 = scalar_select %p244, %s14, 1
          %s246 = smul.addr %s245, 8
          %s247 = scalar_lea.vmem %s1, %s246
        $region36: #{_sample_pallas.1} parent=31 // pred_fallthru
          _
        // Predicated region
        $region37: #{_sample_pallas.1} parent=31 // pred_check
          %p248 = pneg %p81
        $region38: #{_sample_pallas.1} parent=31 // pred_check_branch
          %250 = sbr.rel (%p248) target = $region40
        $region39: #{_sample_pallas.1} parent=31 // pred_region
          %p251 = scmp.lt.s32.totalorder %s14, 1
          %s252 = scalar_select %p251, %s14, 1
          %s253 = smul.addr %s252, 8
          %s254 = scalar_lea.vmem %s2, %s253
        $region40: #{_sample_pallas.1} parent=31 // pred_fallthru
          _
        // Predicated region
        $region41: #{_sample_pallas.1} parent=31 // pred_check
          %p255 = pneg %p107
        $region42: #{_sample_pallas.1} parent=31 // pred_check_branch
          %257 = sbr.rel (%p255) target = $region44
        $region43: #{_sample_pallas.1} parent=31 // pred_region
          %s258 = sand.u32 %s97, 1
          %s259 = sand.u32 %s97, 1
          %s260 = smul.addr %s259, 64
          %s261 = scalar_lea.vmem [#allocation4], %s260
          %s262 = smul.addr %s14, 8
          %s263 = scalar_lea.vmem %s3, %s262
          // Predicated region
          $region45: #{_sample_pallas.1} parent=43 // pred_check
            _
          $region46: #{_sample_pallas.1} parent=43 // pred_check_branch
            %265 = sbr.rel (0) target = $region48
          $region47: #{_sample_pallas.1} parent=43 // pred_region
            // Predicated region
            $region49: #{_sample_pallas.1} parent=47 // pred_check
              _
            $region50: #{_sample_pallas.1} parent=47 // pred_check_branch
              %267 = sbr.rel (0) target = $region52
            $region51: #{_sample_pallas.1} parent=47 // pred_region
              // Predicated region
              $region64: #{_sample_pallas.1} parent=51 // pred_check
                _
              $region65: #{_sample_pallas.1} parent=51 // pred_check_branch
                %297 = sbr.rel (0) target = $region67
              $region66: #{_sample_pallas.1} parent=51 // pred_region
                loop: start=0, step=1, limit=1
                $region68: #{_sample_pallas.1} parent=66 // loop_pre_header
                  _
                $region69: #{_sample_pallas.1} parent=66 // loop_header
                  %s299 = sphi 0, %s303
                  %p300 = scmp.ge.s32.totalorder %s299, 1
                  %s304 = sphi %s263, %s263
                  %s305 = sphi %s261, %s261
                $region70: #{_sample_pallas.1} parent=66 // loop_header_branch
                  %302 = sbr.rel (%p300) target = $region74
                $region71: #{_sample_pallas.1} parent=66 // loop_body
                  %v306 = vld [vmem:[%s304] sm:$0xff]
                  %307 = vst [vmem:[%s305] sm:$0xff] %v306
                  %v308 = vld [vmem:[%s304 + $0x10] sm:$0xff]
                  %309 = vst [vmem:[%s305 + $0x8] sm:$0xff] %v308
                  %v310 = vld [vmem:[%s304 + $0x20] sm:$0xff]
                  %311 = vst [vmem:[%s305 + $0x10] sm:$0xff] %v310
                  %v312 = vld [vmem:[%s304 + $0x30] sm:$0xff]
                  %313 = vst [vmem:[%s305 + $0x18] sm:$0xff] %v312
                  %v314 = vld [vmem:[%s304 + $0x40] sm:$0xff]
                  %315 = vst [vmem:[%s305 + $0x20] sm:$0xff] %v314
                  %v316 = vld [vmem:[%s304 + $0x50] sm:$0xff]
                  %317 = vst [vmem:[%s305 + $0x28] sm:$0xff] %v316
                  %v318 = vld [vmem:[%s304 + $0x60] sm:$0xff]
                  %319 = vst [vmem:[%s305 + $0x30] sm:$0xff] %v318
                  %v320 = vld [vmem:[%s304 + $0x70] sm:$0xff]
                  %321 = vst [vmem:[%s305 + $0x38] sm:$0xff] %v320
                $region72: #{_sample_pallas.1} parent=66 // loop_footer
                  %s303 = sadd.s32 1, %s299
                $region73: #{_sample_pallas.1} parent=66 // loop_footer_branch
                  %298 = sbr.rel target = $region69
                $region74: #{_sample_pallas.1} parent=66 // loop_exit
                  _
              $region67: #{_sample_pallas.1} parent=51 // pred_fallthru
                _
              // Predicated region
              $region75: #{_sample_pallas.1} parent=51 // pred_check
                _
              $region76: #{_sample_pallas.1} parent=51 // pred_check_branch
                %323 = sbr.rel target = $region78
              $region77: #{_sample_pallas.1} parent=51 // pred_region
                _
              $region78: #{_sample_pallas.1} parent=51 // pred_fallthru
                _
            $region52: #{_sample_pallas.1} parent=47 // pred_fallthru
              _
            // Predicated region
            $region53: #{_sample_pallas.1} parent=47 // pred_check
              _
            $region54: #{_sample_pallas.1} parent=47 // pred_check_branch
              %269 = sbr.rel target = $region56
            $region55: #{_sample_pallas.1} parent=47 // pred_region
              %s271 = ssub.s32 256, 1
              loop: start=0, step=1, limit=1
              $region57: #{_sample_pallas.1} parent=55 // loop_pre_header
                _
              $region58: #{_sample_pallas.1} parent=55 // loop_header
                %s273 = sphi 0, %s277
                %p274 = scmp.ge.s32.totalorder %s273, 1
                %s278 = sphi %s263, %s263
                %s279 = sphi %s261, %s261
              $region59: #{_sample_pallas.1} parent=55 // loop_header_branch
                %276 = sbr.rel (%p274) target = $region63
              $region60: #{_sample_pallas.1} parent=55 // loop_body
                %v280 = vld [vmem:[%s278] sm:%s271]
                %281 = vst [vmem:[%s279] sm:%s271] %v280
                %v282 = vld [vmem:[%s278 + $0x10] sm:%s271]
                %283 = vst [vmem:[%s279 + $0x8] sm:%s271] %v282
                %v284 = vld [vmem:[%s278 + $0x20] sm:%s271]
                %285 = vst [vmem:[%s279 + $0x10] sm:%s271] %v284
                %v286 = vld [vmem:[%s278 + $0x30] sm:%s271]
                %287 = vst [vmem:[%s279 + $0x18] sm:%s271] %v286
                %v288 = vld [vmem:[%s278 + $0x40] sm:%s271]
                %289 = vst [vmem:[%s279 + $0x20] sm:%s271] %v288
                %v290 = vld [vmem:[%s278 + $0x50] sm:%s271]
                %291 = vst [vmem:[%s279 + $0x28] sm:%s271] %v290
                %v292 = vld [vmem:[%s278 + $0x60] sm:%s271]
                %293 = vst [vmem:[%s279 + $0x30] sm:%s271] %v292
                %v294 = vld [vmem:[%s278 + $0x70] sm:%s271]
                %295 = vst [vmem:[%s279 + $0x38] sm:%s271] %v294
              $region61: #{_sample_pallas.1} parent=55 // loop_footer
                %s277 = sadd.s32 1, %s273
              $region62: #{_sample_pallas.1} parent=55 // loop_footer_branch
                %272 = sbr.rel target = $region58
              $region63: #{_sample_pallas.1} parent=55 // loop_exit
                _
            $region56: #{_sample_pallas.1} parent=47 // pred_fallthru
              _
          $region48: #{_sample_pallas.1} parent=43 // pred_fallthru
            _
          %324 = vnop
        $region44: #{_sample_pallas.1} parent=31 // pred_fallthru
          _
      $region32: #{_sample_pallas.1} parent=5 // pred_fallthru
        _
      %p325 = scmp.le.s32.totalorder 1, %s14
      %p326 = scmp.lt.s32.totalorder %s14, 3
      %p327 = pnand %p325, %p326
      %p328 = pneg %p327
      // Predicated region
      $region79: #{_sample_pallas.1} parent=5 // pred_check
        _
      $region80: #{_sample_pallas.1} parent=5 // pred_check_branch
        %330 = sbr.rel (%p327) target = $region82
      $region81: #{_sample_pallas.1} parent=5 // pred_region
        %s331 = ssub.s32 %s14, 1
        // Predicated region
        $region83: #{_sample_pallas.1} parent=81 // pred_check
          %p332 = pneg %p35
        $region84: #{_sample_pallas.1} parent=81 // pred_check_branch
          %334 = sbr.rel (%p332) target = $region86
        $region85: #{_sample_pallas.1} parent=81 // pred_region
          %335 = dma.done [#allocation3], 128
        $region86: #{_sample_pallas.1} parent=81 // pred_fallthru
          _
        %s336 = sand.u32 %s100, 1
        %s337 = sand.u32 %s100, 1
        %s338 = smul.addr %s337, 64
        %s339 = scalar_lea.vmem [#allocation4], %s338
        // Predicated region
        $region87: #{_sample_pallas.1} parent=81 // pred_check
          %p340 = pneg %p113
        $region88: #{_sample_pallas.1} parent=81 // pred_check_branch
          %342 = sbr.rel (%p340) target = $region90
        $region89: #{_sample_pallas.1} parent=81 // pred_region
          _
        $region90: #{_sample_pallas.1} parent=81 // pred_fallthru
          _
        %343 = sfence
        %p344 = pneg %p35
        %p345 = pneg %p32
        %p346 = scmp.lt.s32.totalorder %s19, 1
        %s347 = scalar_select %p346, %s19, 1
        %s348 = smul.addr %s347, 8
        %s349 = scalar_lea.vmem %s1, %s348
        %p350 = pneg %p61
        %p351 = pneg %p58
        %p352 = scmp.lt.s32.totalorder %s19, 1
        %s353 = scalar_select %p352, %s19, 1
        %s354 = smul.addr %s353, 8
        %s355 = scalar_lea.vmem %s2, %s354
        %p356 = pneg %p87
        %p357 = pneg %p84
        %s358 = sand.u32 %s100, 1
        %s359 = sand.u32 %s100, 1
        %s360 = smul.addr %s359, 64
        %s361 = scalar_lea.vmem [#allocation4], %s360
        %p362 = pneg %p113
        %p363 = pneg %p110
        %p364 = pneg %p134
        %p365 = pneg %p131
        %p366 = pneg %p155
        %p367 = pneg %p152
        %p368 = pneg %p176
        %p369 = pneg %p173
        %p370 = pneg %p202
        %p371 = pneg %p199
        %p372 = scmp.lt.s32.totalorder %s19, 1
        %s373 = scalar_select %p372, %s19, 1
        %s374 = smul.addr %s373, 8
        %s375 = scalar_lea.vmem %s7, %s374
        %p376 = scmp.lt.s32.totalorder %s19, 1
        %s377 = scalar_select %p376, %s19, 1
        %s378 = smul.addr %s377, 8
        %s379 = scalar_lea.vmem %s1, %s378
        %p380 = scmp.lt.s32.totalorder %s19, 1
        %s381 = scalar_select %p380, %s19, 1
        %s382 = smul.addr %s381, 8
        %s383 = scalar_lea.vmem %s2, %s382
        %p384 = scmp.lt.s32.totalorder %s19, 1
        %s385 = scalar_select %p384, %s19, 1
        %s386 = smul.addr %s385, 8
        %s387 = scalar_lea.vmem %s7, %s386
        %v388 = vld [vmem:[%s6] sm:$0xff]
        %v389 = vld [vmem:[%s4] sm:$0xff]
        %v390 = vld [vmem:[%s379] sm:$0xff]
        %vm391 = vcmask 64512
        %v393 = vsel %vm391, %v389, 0
        %395 = vmatprep.subr.mxu0 0.0
        %396 = vmatpush1.msra.mxu0 0.0
        %397 = vmatprep.subr.mxu0 0.0
        %398 = vmatpush1.msra.mxu0 0.0
        %399 = vmatprep.subr.mxu0 0.0
        %400 = vmatpush1.msra.mxu0 0.0
        %401 = vmatprep.subr.mxu0 0.0
        %402 = vmatpush1.msra.mxu0 0.0
        %403 = vmatprep.subr.mxu0 0.0
        %404 = vmatpush1.msra.mxu0 0.0
        %405 = vmatprep.subr.mxu0 0.0
        %406 = vmatpush1.msra.mxu0 0.0
        %407 = vmatprep.subr.mxu0 0.0
        %408 = vmatpush1.msra.mxu0 0.0
        %409 = vmatprep.subr.mxu0 0.0
        %410 = vmatpush1.msra.mxu0 0.0
        %411 = vmatprep.subr.mxu0 0.0
        %412 = vmatpush1.msra.mxu0 0.0
        %413 = vmatprep.subr.mxu0 0.0
        %414 = vmatpush1.msra.mxu0 0.0
        %415 = vmatprep.subr.mxu0 0.0
        %416 = vmatpush1.msra.mxu0 0.0
        %417 = vmatprep.subr.mxu0 0.0
        %418 = vmatpush1.msra.mxu0 0.0
        %419 = vmatprep.subr.mxu0 0.0
        %420 = vmatpush1.msra.mxu0 0.0
        %421 = vmatprep.subr.mxu0 0.0
        %422 = vmatpush1.msra.mxu0 0.0
        %423 = vmatprep.subr.mxu0 0.0
        %424 = vmatpush1.msra.mxu0 0.0
        %425 = vmatprep.subr.mxu0 0.0
        %426 = vmatpush1.msra.mxu0 %v390
        %427 = vmatprep.subr.mxu0 0.0
        %428 = vmatpush2.msra.mxu0 0.0
        %429 = vmatprep.subr.mxu0 0.0
        %430 = vmatpush2.msra.mxu0 0.0
        %431 = vmatprep.subr.mxu0 0.0
        %432 = vmatpush2.msra.mxu0 0.0
        %433 = vmatprep.subr.mxu0 0.0
        %434 = vmatpush2.msra.mxu0 0.0
        %435 = vmatprep.subr.mxu0 0.0
        %436 = vmatpush2.msra.mxu0 0.0
        %437 = vmatprep.subr.mxu0 0.0
        %438 = vmatpush2.msra.mxu0 0.0
        %439 = vmatprep.subr.mxu0 0.0
        %440 = vmatpush2.msra.mxu0 0.0
        %441 = vmatprep.subr.mxu0 0.0
        %442 = vmatpush2.msra.mxu0 0.0
        %443 = vmatprep.subr.mxu0 0.0
        %444 = vmatpush2.msra.mxu0 0.0
        %445 = vmatprep.subr.mxu0 0.0
        %446 = vmatpush2.msra.mxu0 0.0
        %447 = vmatprep.subr.mxu0 0.0
        %448 = vmatpush2.msra.mxu0 0.0
        %449 = vmatprep.subr.mxu0 0.0
        %450 = vmatpush2.msra.mxu0 0.0
        %451 = vmatprep.subr.mxu0 0.0
        %452 = vmatpush2.msra.mxu0 0.0
        %453 = vmatprep.subr.mxu0 0.0
        %454 = vmatpush2.msra.mxu0 0.0
        %455 = vmatprep.subr.mxu0 0.0
        %456 = vmatpush2.msra.mxu0 0.0
        %457 = vmatprep.subr.mxu0 0.0
        %458 = vmatpush2.msra.mxu0 0.0
        %459 = vmatprep.mubr.f32.mxu0 0.0
        %460 = vmatmul.mubr.f32.gmra.mxu0 %v393
        %v461 = vpop.f32.mrf.mxu0
        %v462 = vadd.f32 0.0, %v461
        %v463 = vpop.f32.mrf.mxu0
        %464 = vdwg.mxu0
        %466 = vset.pattern.permute.xlu0 0
        %467 = vperm.xlu0 %466, %v388
        %v468 = vpop.permute.xlu0 %467
        %v470 = vadd.f32 %v468, %v462
        %v471 = vld [vmem:[%s5] sm:$0xff]
        %v472 = vld [vmem:[%s383] sm:$0xff]
        loop: start=0, step=1, limit=7
        $region91: #{_sample_pallas.1} parent=81 // loop_pre_header
          _
        $region92: #{_sample_pallas.1} parent=81 // loop_header
          %s474 = sphi 0, %s478
          %p475 = scmp.ge.s32.totalorder %s474, 7
          %v479 = vphi %v472, %v592
        $region93: #{_sample_pallas.1} parent=81 // loop_header_branch
          %477 = sbr.rel (%p475) target = $region97
        $region94: #{_sample_pallas.1} parent=81 // loop_body
          %s480 = sld [smem:[#allocation2 + %s474]]
          %s481 = sshra.s32 %s474, 7
          %s482 = sand.u32 %s474, 127
          %s483 = sadd.s32 %s481, 1
          %s484 = smul.u32 %s483, 128
          %s485 = sshra.s32 %s474, 7
          %s486 = sand.u32 %s474, 127
          %s487 = sadd.s32 %s484, %s486
          %s488 = sld [smem:[#allocation2 + %s487]]
          %s489 = sadd.s32 %s481, 2
          %s490 = smul.u32 %s489, 128
          %s491 = sadd.s32 %s490, %s486
          %s492 = sld [smem:[#allocation2 + %s491]]
          %s493 = sadd.s32 %s481, 3
          %s494 = smul.u32 %s493, 128
          %s495 = sadd.s32 %s494, %s486
          %s496 = sld [smem:[#allocation2 + %s495]]
          %v498 = vsel %vm391, %v471, 0
          %500 = vmatprep.subr.mxu0 0.0
          %501 = vmatpush1.msra.mxu0 0.0
          %502 = vmatprep.subr.mxu0 0.0
          %503 = vmatpush1.msra.mxu0 0.0
          %504 = vmatprep.subr.mxu0 0.0
          %505 = vmatpush1.msra.mxu0 0.0
          %506 = vmatprep.subr.mxu0 0.0
          %507 = vmatpush1.msra.mxu0 0.0
          %508 = vmatprep.subr.mxu0 0.0
          %509 = vmatpush1.msra.mxu0 0.0
          %510 = vmatprep.subr.mxu0 0.0
          %511 = vmatpush1.msra.mxu0 0.0
          %512 = vmatprep.subr.mxu0 0.0
          %513 = vmatpush1.msra.mxu0 0.0
          %514 = vmatprep.subr.mxu0 0.0
          %515 = vmatpush1.msra.mxu0 0.0
          %516 = vmatprep.subr.mxu0 0.0
          %517 = vmatpush1.msra.mxu0 0.0
          %518 = vmatprep.subr.mxu0 0.0
          %519 = vmatpush1.msra.mxu0 0.0
          %520 = vmatprep.subr.mxu0 0.0
          %521 = vmatpush1.msra.mxu0 0.0
          %522 = vmatprep.subr.mxu0 0.0
          %523 = vmatpush1.msra.mxu0 0.0
          %524 = vmatprep.subr.mxu0 0.0
          %525 = vmatpush1.msra.mxu0 0.0
          %526 = vmatprep.subr.mxu0 0.0
          %527 = vmatpush1.msra.mxu0 0.0
          %528 = vmatprep.subr.mxu0 0.0
          %529 = vmatpush1.msra.mxu0 0.0
          %530 = vmatprep.subr.mxu0 0.0
          %531 = vmatpush1.msra.mxu0 %v479
          %532 = vmatprep.subr.mxu0 0.0
          %533 = vmatpush2.msra.mxu0 0.0
          %534 = vmatprep.subr.mxu0 0.0
          %535 = vmatpush2.msra.mxu0 0.0
          %536 = vmatprep.subr.mxu0 0.0
          %537 = vmatpush2.msra.mxu0 0.0
          %538 = vmatprep.subr.mxu0 0.0
          %539 = vmatpush2.msra.mxu0 0.0
          %540 = vmatprep.subr.mxu0 0.0
          %541 = vmatpush2.msra.mxu0 0.0
          %542 = vmatprep.subr.mxu0 0.0
          %543 = vmatpush2.msra.mxu0 0.0
          %544 = vmatprep.subr.mxu0 0.0
          %545 = vmatpush2.msra.mxu0 0.0
          %546 = vmatprep.subr.mxu0 0.0
          %547 = vmatpush2.msra.mxu0 0.0
          %548 = vmatprep.subr.mxu0 0.0
          %549 = vmatpush2.msra.mxu0 0.0
          %550 = vmatprep.subr.mxu0 0.0
          %551 = vmatpush2.msra.mxu0 0.0
          %552 = vmatprep.subr.mxu0 0.0
          %553 = vmatpush2.msra.mxu0 0.0
          %554 = vmatprep.subr.mxu0 0.0
          %555 = vmatpush2.msra.mxu0 0.0
          %556 = vmatprep.subr.mxu0 0.0
          %557 = vmatpush2.msra.mxu0 0.0
          %558 = vmatprep.subr.mxu0 0.0
          %559 = vmatpush2.msra.mxu0 0.0
          %560 = vmatprep.subr.mxu0 0.0
          %561 = vmatpush2.msra.mxu0 0.0
          %562 = vmatprep.subr.mxu0 0.0
          %563 = vmatpush2.msra.mxu0 0.0
          %564 = vmatprep.mubr.f32.mxu0 0.0
          %565 = vmatmul.mubr.f32.gmra.mxu0 %v498
          %v566 = vpop.f32.mrf.mxu0
          %v567 = vadd.f32 0.0, %v566
          %v568 = vpop.f32.mrf.mxu0
          %569 = vdwg.mxu0
          %v570 = vadd.f32 %v470, %v567
          %v571 = vstv %s480
          %v572 = vmul.f32 %v571, %v479
          %v573 = vstv %s488
          %v574 = vmul.f32 %v573, %v570
          %v575 = vsub.f32 %v572, %v574
          %v576 = vmax.f32 %v575, -1.0
          %v577 = vmin.f32 %v576, 1.0
          %v578 = vstv %s492
          %v579 = vmul.f32 %v578, %v577
          %v580 = vstv %s496
          %v581 = vmul.f32 %v580, %v479
          %v582 = vadd.f32 %v579, %v581
          %s583 = sadd.s32 %s481, 4
          %s584 = smul.u32 %s583, 128
          %s585 = sadd.s32 %s584, %s486
          %s586 = sld [smem:[#allocation2 + %s585]]
          %s587 = smul.u32 %s474, 8
          %s588 = scalar_lea.vmem %s339, %s587 [#allocation4]
          %v589 = vld [vmem:[%s588] sm:$0xff]
          %v590 = vstv %s586
          %v591 = vmul.f32 %v590, %v589
          %v592 = vadd.f32 %v582, %v591
        $region95: #{_sample_pallas.1} parent=81 // loop_footer
          %s478 = sadd.s32 1, %s474
        $region96: #{_sample_pallas.1} parent=81 // loop_footer_branch
          %473 = sbr.rel target = $region92
        $region97: #{_sample_pallas.1} parent=81 // loop_exit
          _
        %s593 = sld [smem:[#allocation2 + $0x7]]
        %s594 = sld [smem:[#allocation2 + $0x87]]
        %s595 = sld [smem:[#allocation2 + $0x107]]
        %s596 = sld [smem:[#allocation2 + $0x187]]
        %v598 = vsel %vm391, %v471, 0
        %600 = vmatprep.subr.mxu0 0.0
        %601 = vmatpush1.msra.mxu0 0.0
        %602 = vmatprep.subr.mxu0 0.0
        %603 = vmatpush1.msra.mxu0 0.0
        %604 = vmatprep.subr.mxu0 0.0
        %605 = vmatpush1.msra.mxu0 0.0
        %606 = vmatprep.subr.mxu0 0.0
        %607 = vmatpush1.msra.mxu0 0.0
        %608 = vmatprep.subr.mxu0 0.0
        %609 = vmatpush1.msra.mxu0 0.0
        %610 = vmatprep.subr.mxu0 0.0
        %611 = vmatpush1.msra.mxu0 0.0
        %612 = vmatprep.subr.mxu0 0.0
        %613 = vmatpush1.msra.mxu0 0.0
        %614 = vmatprep.subr.mxu0 0.0
        %615 = vmatpush1.msra.mxu0 0.0
        %616 = vmatprep.subr.mxu0 0.0
        %617 = vmatpush1.msra.mxu0 0.0
        %618 = vmatprep.subr.mxu0 0.0
        %619 = vmatpush1.msra.mxu0 0.0
        %620 = vmatprep.subr.mxu0 0.0
        %621 = vmatpush1.msra.mxu0 0.0
        %622 = vmatprep.subr.mxu0 0.0
        %623 = vmatpush1.msra.mxu0 0.0
        %624 = vmatprep.subr.mxu0 0.0
        %625 = vmatpush1.msra.mxu0 0.0
        %626 = vmatprep.subr.mxu0 0.0
        %627 = vmatpush1.msra.mxu0 0.0
        %628 = vmatprep.subr.mxu0 0.0
        %629 = vmatpush1.msra.mxu0 0.0
        %630 = vmatprep.subr.mxu0 0.0
        %631 = vmatpush1.msra.mxu0 %v479
        %632 = vmatprep.subr.mxu0 0.0
        %633 = vmatpush2.msra.mxu0 0.0
        %634 = vmatprep.subr.mxu0 0.0
        %635 = vmatpush2.msra.mxu0 0.0
        %636 = vmatprep.subr.mxu0 0.0
        %637 = vmatpush2.msra.mxu0 0.0
        %638 = vmatprep.subr.mxu0 0.0
        %639 = vmatpush2.msra.mxu0 0.0
        %640 = vmatprep.subr.mxu0 0.0
        %641 = vmatpush2.msra.mxu0 0.0
        %642 = vmatprep.subr.mxu0 0.0
        %643 = vmatpush2.msra.mxu0 0.0
        %644 = vmatprep.subr.mxu0 0.0
        %645 = vmatpush2.msra.mxu0 0.0
        %646 = vmatprep.subr.mxu0 0.0
        %647 = vmatpush2.msra.mxu0 0.0
        %648 = vmatprep.subr.mxu0 0.0
        %649 = vmatpush2.msra.mxu0 0.0
        %650 = vmatprep.subr.mxu0 0.0
        %651 = vmatpush2.msra.mxu0 0.0
        %652 = vmatprep.subr.mxu0 0.0
        %653 = vmatpush2.msra.mxu0 0.0
        %654 = vmatprep.subr.mxu0 0.0
        %655 = vmatpush2.msra.mxu0 0.0
        %656 = vmatprep.subr.mxu0 0.0
        %657 = vmatpush2.msra.mxu0 0.0
        %658 = vmatprep.subr.mxu0 0.0
        %659 = vmatpush2.msra.mxu0 0.0
        %660 = vmatprep.subr.mxu0 0.0
        %661 = vmatpush2.msra.mxu0 0.0
        %662 = vmatprep.subr.mxu0 0.0
        %663 = vmatpush2.msra.mxu0 0.0
        %664 = vmatprep.mubr.f32.mxu0 0.0
        %665 = vmatmul.mubr.f32.gmra.mxu0 %v598
        %v666 = vpop.f32.mrf.mxu0
        %v667 = vadd.f32 0.0, %v666
        %v668 = vpop.f32.mrf.mxu0
        %669 = vdwg.mxu0
        %v670 = vadd.f32 %v470, %v667
        %v671 = vstv %s593
        %v672 = vmul.f32 %v671, %v479
        %v673 = vstv %s594
        %v674 = vmul.f32 %v673, %v670
        %v675 = vsub.f32 %v672, %v674
        %v676 = vmax.f32 %v675, -1.0
        %v677 = vmin.f32 %v676, 1.0
        %v678 = vstv %s595
        %v679 = vmul.f32 %v678, %v677
        %v680 = vstv %s596
        %v681 = vmul.f32 %v680, %v479
        %v682 = vadd.f32 %v679, %v681
        %v683 = vmax.f32 %v682, -1.0
        %v684 = vmin.f32 %v683, 1.0
        %685 = vst [vmem:[%s387] sm:$0xff] %v684
        %p686 = scmp.lt.s32.totalorder %s19, 1
        %s687 = scalar_select %p686, %s19, 1
        %s688 = smul.addr %s687, 8
        %s689 = scalar_lea.vmem %s7, %s688
        // Predicated region
        $region98: #{_sample_pallas.1} parent=81 // pred_check
          %p690 = pneg %p199
        $region99: #{_sample_pallas.1} parent=81 // pred_check_branch
          %692 = sbr.rel (%p690) target = $region101
        $region100: #{_sample_pallas.1} parent=81 // pred_region
          _
        $region101: #{_sample_pallas.1} parent=81 // pred_fallthru
          _
      $region82: #{_sample_pallas.1} parent=5 // pred_fallthru
        _
      %p693 = scmp.le.s32.totalorder 2, %s14
      // Predicated region
      $region102: #{_sample_pallas.1} parent=5 // pred_check
        %p694 = pneg %p693
      $region103: #{_sample_pallas.1} parent=5 // pred_check_branch
        %696 = sbr.rel (%p694) target = $region105
      $region104: #{_sample_pallas.1} parent=5 // pred_region
        %s697 = ssub.s32 %s14, 2
        // Predicated region
        $region106: #{_sample_pallas.1} parent=104 // pred_check
          %p698 = pneg %p205
        $region107: #{_sample_pallas.1} parent=104 // pred_check_branch
          %700 = sbr.rel (%p698) target = $region109
        $region108: #{_sample_pallas.1} parent=104 // pred_region
          %p701 = scmp.lt.s32.totalorder %s20, 1
          %s702 = scalar_select %p701, %s20, 1
          %s703 = smul.addr %s702, 8
          %s704 = scalar_lea.vmem %s7, %s703
        $region109: #{_sample_pallas.1} parent=104 // pred_fallthru
          _
      $region105: #{_sample_pallas.1} parent=5 // pred_fallthru
        _
    $region6: #{_sample_pallas.1} parent=1 // loop_footer
      %s18 = sadd.s32 1, %s14
    $region7: #{_sample_pallas.1} parent=1 // loop_footer_branch
      %13 = sbr.rel target = $region3
    $region8: #{_sample_pallas.1} parent=1 // loop_exit
      _
    %705 = vsyncpa [#allocation3], 1
    %s706 = scalar_lea.sflag [#allocation3], 1
    %707 = vsyncpa %s706, 1

</llo_original>
